<compile_context>
chip_gen: v5e
topology: v5e:2x2
jax: 0.10.0
libtpu: 0.0.40
codegen_flags: <defaults>
</compile_context>

<pallas_src>
import functools

import jax
import jax.numpy as jnp
from jax.experimental import pallas as pl
from jax.experimental.pallas import tpu as pltpu


# ----------------------------- config ----------------------------------------
B = 2                  # batch
MSG = 16               # config.message_size
HID = 32               # config.receiver_hidden_dim
STOP = 1               # config.stop_size
DESC_DIM = 8           # config.descriptor_dim
N_DESC = 4             # number of class descriptors
SCORE = 1              # config.receiver_score_dim (must be 1 for the torch code)

GATE_PAD = 128         # fused n|r|z gate width (96) zero-padded to a full vreg

# ---- parameter-slab lane layout (all 128-aligned block starts) ---------------
L_WX = 0               # [0,128)    GRU x-gates  (rows 0:MSG)
L_WH = 128             # [128,256)  GRU h-gates  (rows 0:HID)
L_FUSED = 256          # [256,512)  fused h_new block (rows 0:HID):
F_STATE = N_DESC * HID  #   + 128 : state_layer weight (32 lanes)
F_STOP = F_STATE + HID  #   + 160 : stop_layer weight (1 lane)
FUSED_W = 256
L_DESCBIG = 512        # [512,640)  block-diag y1 descriptor weight (rows 0:32)
L_W2 = 640             # [640,768)  y2 weight tiled as ONE row (row 0)
L_WDESC = 768          # [768,896)  descriptor_layer weight (rows 0:DESC_DIM)
L_WMSG = 896           # [896,1024) message_layer weight (rows 0:HID)
LANES = 1024
BIAS_ROW = 32          # row 32 of the slab holds every bias, lane-aligned with its weight
SLAB_ROWS = 40

# ---- packed lane-dense output layout -----------------------------------------
NS_OFF = 0                        # new_state      [0, 32)
MD_OFF = HID                      # message_dist   [32, 48)
MB_OFF = HID + MSG                # outp_msg bits  [48, 64)
Y_OFF = HID + 2 * MSG             # y scores       [64, 68)
SD_OFF = Y_OFF + N_DESC * SCORE   # stop_dist      [68, 69)
SB_OFF = SD_OFF + STOP            # stop_bit       [69, 70)
SLAB = 128


def _sigmoid(x):
    # exact sigmoid: the result feeds jnp.round (bit thresholds), so no approx.
    return 1.0 / (1.0 + jnp.exp(-x))


# ----------------------------- fused recurrent kernel -------------------------
def receiver_seq_kernel(msg_ref, st0_ref, dpack_ref, prm_ref, out_ref,
                        h_ref, dc_ref):
    t = pl.program_id(0)

    # One-time init: recurrent state + batch-independent descriptor contribution
    # to the pair-MLP hidden layer (amortized over all T steps).
    @pl.when(t == 0)
    def _():
        h_ref[...] = st0_ref[...]
        dvec = dpack_ref[N_DESC:N_DESC + 1, :]                       # (1, N*D)
        dc_ref[...] = jnp.dot(
            dvec, prm_ref[0:N_DESC * DESC_DIM, L_DESCBIG:L_DESCBIG + N_DESC * HID],
            preferred_element_type=jnp.float32)                      # (1, N*HID)

    x = msg_ref[0]                    # (B, MSG)   streamed message for step t
    h = h_ref[...]                    # (B, HID)   carried state

    # --- GRUCell: two fused gate matmuls, gate order n|r|z --------------------
    gi = (jnp.dot(x, prm_ref[0:MSG, L_WX:L_WX + GATE_PAD],
                  preferred_element_type=jnp.float32)
          + prm_ref[BIAS_ROW:BIAS_ROW + 1, L_WX:L_WX + GATE_PAD])
    gh = (jnp.dot(h, prm_ref[0:HID, L_WH:L_WH + GATE_PAD],
                  preferred_element_type=jnp.float32)
          + prm_ref[BIAS_ROW:BIAS_ROW + 1, L_WH:L_WH + GATE_PAD])
    r = _sigmoid(gi[:, HID:2 * HID] + gh[:, HID:2 * HID])
    z = _sigmoid(gi[:, 2 * HID:3 * HID] + gh[:, 2 * HID:3 * HID])
    n = jnp.tanh(gi[:, 0:HID] + r * gh[:, 0:HID])
    h_new = (1.0 - z) * n + z * h
    h_ref[...] = h_new                # carry to next timestep

    # --- ONE fused matmul for everything that consumes h_new ------------------
    fused = (jnp.dot(h_new, prm_ref[0:HID, L_FUSED:L_FUSED + FUSED_W],
                     preferred_element_type=jnp.float32)
             + prm_ref[BIAS_ROW:BIAS_ROW + 1, L_FUSED:L_FUSED + FUSED_W])  # (B,256)
    h1 = jnp.maximum(fused[:, 0:N_DESC * HID] + dc_ref[...], 0.0)    # (B, N*HID)
    ms_pre = fused[:, F_STATE:F_STATE + HID]                         # state_layer(h)+b
    sd = _sigmoid(fused[:, F_STOP:F_STOP + STOP])                    # stop_dist (B,1)
    sb = jnp.round(sd)

    # --- y2 head over the block layout: broadcast * + per-descriptor lane sum -
    prod = h1 * prm_ref[0:1, L_W2:L_W2 + N_DESC * HID]               # (B, N*HID)
    y = jnp.concatenate(
        [jnp.sum(prod[:, q * HID:(q + 1) * HID], axis=1, keepdims=True)
         for q in range(N_DESC)], axis=1)
    y = y + prm_ref[BIAS_ROW:BIAS_ROW + 1, L_W2:L_W2 + N_DESC]       # (B, N_DESC)

    # --- softmax over descriptors + reweight_descriptors -----------------------
    e = jnp.exp(y - jnp.max(y, axis=1, keepdims=True))
    p = e / jnp.sum(e, axis=1, keepdims=True)
    infl = jnp.dot(p, dpack_ref[0:N_DESC, 0:DESC_DIM],
                   preferred_element_type=jnp.float32)               # (B, DESC_DIM)

    # --- message head -----------------------------------------------------------
    ms = jnp.tanh(ms_pre + jnp.dot(infl, prm_ref[0:DESC_DIM, L_WDESC:L_WDESC + HID],
                                   preferred_element_type=jnp.float32))
    md = _sigmoid(jnp.dot(ms, prm_ref[0:HID, L_WMSG:L_WMSG + MSG],
                          preferred_element_type=jnp.float32)
                  + prm_ref[BIAS_ROW:BIAS_ROW + 1, L_WMSG:L_WMSG + MSG])
    mb = jnp.round(md)

    # --- direct lane-offset stores into the packed lane-dense output row --------
    out_ref[0, :, NS_OFF:NS_OFF + HID] = h_new
    out_ref[0, :, MD_OFF:MD_OFF + MSG] = md
    out_ref[0, :, MB_OFF:MB_OFF + MSG] = mb
    out_ref[0, :, Y_OFF:Y_OFF + N_DESC * SCORE] = y
    out_ref[0, :, SD_OFF:SD_OFF + STOP] = sd
    out_ref[0, :, SB_OFF:SB_OFF + STOP] = sb


# ----------------------------- wrappers ----------------------------------------
def _pack_descriptors(class_descriptors):
    """Pack the (N,D) table and its row-major flatten into ONE small buffer."""
    dp = jnp.zeros((8, N_DESC * DESC_DIM), jnp.float32)
    dp = dp.at[0:N_DESC, 0:DESC_DIM].set(class_descriptors)
    dp = dp.at[N_DESC, :].set(class_descriptors.reshape(N_DESC * DESC_DIM))
    return dp


def _receiver_call(params, messages, state0, class_descriptors):
    """Run T recurrent Receiver steps in one pallas_call; returns (T, B, SLAB)."""
    t_steps, batch, _ = messages.shape
    dpack = _pack_descriptors(class_descriptors)
    slab = params["slab"]

    flops_step = 2 * batch * (MSG * GATE_PAD + HID * GATE_PAD + HID * FUSED_W
                              + N_DESC * HID + N_DESC * DESC_DIM
                              + DESC_DIM * HID + HID * MSG)
    cost = pl.CostEstimate(
        flops=int(t_steps * flops_step + 2 * N_DESC * DESC_DIM * N_DESC * HID),
        transcendentals=int(t_steps * batch * (3 * HID + STOP + N_DESC + HID + MSG)),
        bytes_accessed=int(4 * (slab.size + dpack.size + state0.size
                                + messages.size + t_steps * batch * SLAB)))

    return pl.pallas_call(
        receiver_seq_kernel,
        out_shape=jax.ShapeDtypeStruct((t_steps, batch, SLAB), jnp.float32),
        grid_spec=pltpu.PrefetchScalarGridSpec(
            num_scalar_prefetch=0,
            grid=(t_steps,),
            in_specs=[
                pl.BlockSpec((1, batch, MSG), lambda t: (t, 0, 0)),   # streamed
                pl.BlockSpec((batch, HID), lambda t: (0, 0)),         # resident
                pl.BlockSpec((8, N_DESC * DESC_DIM), lambda t: (0, 0)),
                pl.BlockSpec((SLAB_ROWS, LANES), lambda t: (0, 0)),   # resident
            ],
            out_specs=pl.BlockSpec((1, batch, SLAB), lambda t: (t, 0, 0)),
            scratch_shapes=[pltpu.VMEM((batch, HID), jnp.float32),
                            pltpu.VMEM((1, N_DESC * HID), jnp.float32)]),
        compiler_params=pltpu.CompilerParams(
            dimension_semantics=("arbitrary",)),   # recurrence axis
        cost_estimate=cost,
    )(messages, state0, dpack, slab)


def _unpack(slab):
    new_state = slab[..., NS_OFF:NS_OFF + HID]
    message_dist = slab[..., MD_OFF:MD_OFF + MSG]
    outp_msg = slab[..., MB_OFF:MB_OFF + MSG]
    y = slab[..., Y_OFF:Y_OFF + N_DESC * SCORE]
    stop_dist = slab[..., SD_OFF:SD_OFF + STOP]
    stop_bit = slab[..., SB_OFF:SB_OFF + STOP]
    return ((stop_bit, stop_dist), (outp_msg, message_dist), y, new_state)


def receiver_forward(params, message, state, image, class_descriptors):
    """Single step — matches torch Receiver.forward (eval mode)."""
    del image  # unused by Receiver.forward (kept for signature parity)
    slab = _receiver_call(params, message[None], state, class_descriptors)[0]
    return _unpack(slab)


def receiver_forward_seq(params, messages, state0, class_descriptors):
    """T recurrent steps fused into one kernel; every output gets a leading T axis."""
    return _unpack(_receiver_call(params, messages, state0, class_descriptors))


# ----------------------------- one-time parameter packing -----------------------
def prepare_params(p):
    """Fold / fuse / block-diagonalize raw params into ONE (40, 1024) slab."""
    assert HID % N_DESC == 0 and SCORE == 1
    f32 = jnp.float32
    eye = jnp.eye(N_DESC, dtype=f32)

    # fused GRU gates, order n|r|z ; r/z biases pre-folded, b_hn stays on h side
    w_x = jnp.concatenate([p["w_in"], p["w_ir"], p["w_iz"]], axis=1)
    w_h = jnp.concatenate([p["w_hn"], p["w_hr"], p["w_hz"]], axis=1)
    b_x = jnp.concatenate([p["b_in"], p["b_ir"] + p["b_hr"], p["b_iz"] + p["b_hz"]], axis=1)
    b_h = jnp.concatenate([p["b_hn"], jnp.zeros((1, 2 * HID), f32)], axis=1)

    # exact reproduction of torch build_state_descriptor_pairs:
    # pair_left[b*N+q, c] = state[b, q*(HID//N) + c//N]  -> block-diag lift
    w_y1_state = p["w_y1"][:HID]
    w_y1_desc = p["w_y1"][HID:]
    w_agg = w_y1_state.reshape(HID // N_DESC, N_DESC, HID).sum(axis=1)   # (HID/N, HID)
    w1_big = jnp.kron(eye, w_agg)                                        # (HID, N*HID)
    wdesc_big = jnp.kron(eye, w_y1_desc)                                 # (N*D, N*HID)
    b1_big = jnp.tile(p["b_y1"], (1, N_DESC))                            # (1, N*HID)
    w2_tile = jnp.tile(p["w_y2"].T, (1, N_DESC))                         # (1, N*HID)
    b2_big = jnp.tile(p["b_y2"], (1, N_DESC))                            # (1, N)

    slab = jnp.zeros((SLAB_ROWS, LANES), f32)
    # weights
    slab = slab.at[0:MSG, L_WX:L_WX + 3 * HID].set(w_x)
    slab = slab.at[0:HID, L_WH:L_WH + 3 * HID].set(w_h)
    slab = slab.at[0:HID, L_FUSED:L_FUSED + N_DESC * HID].set(w1_big)
    slab = slab.at[0:HID, L_FUSED + F_STATE:L_FUSED + F_STATE + HID].set(p["w_state"])
    slab = slab.at[0:HID, L_FUSED + F_STOP:L_FUSED + F_STOP + STOP].set(p["w_stop"])
    slab = slab.at[0:N_DESC * DESC_DIM, L_DESCBIG:L_DESCBIG + N_DESC * HID].set(wdesc_big)
    slab = slab.at[0:1, L_W2:L_W2 + N_DESC * HID].set(w2_tile)
    slab = slab.at[0:DESC_DIM, L_WDESC:L_WDESC + HID].set(p["w_desc"])
    slab = slab.at[0:HID, L_WMSG:L_WMSG + MSG].set(p["w_msg"])
    # biases (row 32, lane-aligned with their weight blocks)
    slab = slab.at[BIAS_ROW, L_WX:L_WX + 3 * HID].set(b_x[0])
    slab = slab.at[BIAS_ROW, L_WH:L_WH + 3 * HID].set(b_h[0])
    slab = slab.at[BIAS_ROW, L_FUSED:L_FUSED + N_DESC * HID].set(b1_big[0])
    slab = slab.at[BIAS_ROW, L_FUSED + F_STATE:L_FUSED + F_STATE + HID].set(p["b_state"][0])
    slab = slab.at[BIAS_ROW, L_FUSED + F_STOP:L_FUSED + F_STOP + STOP].set(p["b_stop"][0])
    slab = slab.at[BIAS_ROW, L_W2:L_W2 + N_DESC].set(b2_big[0])
    slab = slab.at[BIAS_ROW, L_WMSG:L_WMSG + MSG].set(p["b_msg"][0])
    return {"slab": slab}


# ----------------------------- pure-JAX reference (torch math, eval mode) -------
def receiver_reference(p, message, state, class_descriptors):
    def lin(x, w, b=None):
        y = x @ w
        return y + b if b is not None else y
    r = jax.nn.sigmoid(lin(message, p["w_ir"], p["b_ir"]) + lin(state, p["w_hr"], p["b_hr"]))
    z = jax.nn.sigmoid(lin(message, p["w_iz"], p["b_iz"]) + lin(state, p["w_hz"], p["b_hz"]))
    n = jnp.tanh(lin(message, p["w_in"], p["b_in"]) + r * lin(state, p["w_hn"], p["b_hn"]))
    new_state = (1.0 - z) * n + z * state
    stop_dist = jax.nn.sigmoid(lin(new_state, p["w_stop"], p["b_stop"]))
    stop_bit = jnp.round(stop_dist)
    bsz, ssz = new_state.shape
    nde, dsz = class_descriptors.shape
    pair_left = jnp.broadcast_to(new_state[:, :, None], (bsz, ssz, nde)).reshape(bsz * nde, ssz)
    pair_right = jnp.broadcast_to(class_descriptors[None], (bsz, nde, dsz)).reshape(bsz * nde, dsz)
    pairs = jnp.concatenate([pair_left, pair_right], axis=1)
    yh = jnp.maximum(lin(pairs, p["w_y1"], p["b_y1"]), 0.0)
    y = lin(yh, p["w_y2"], p["b_y2"]).reshape(bsz, -1)
    y_scores = jax.nn.softmax(y, axis=1)
    infl = y_scores @ class_descriptors
    ms = jnp.tanh(lin(new_state, p["w_state"], p["b_state"]) + infl @ p["w_desc"])
    md = jax.nn.sigmoid(lin(ms, p["w_msg"], p["b_msg"]))
    outp_msg = jnp.round(md)
    return ((stop_bit, stop_dist), (outp_msg, md), y, new_state)


# ----------------------------- deterministic raw parameter init -----------------
def init_params(key):
    def uniform(k, shape, fan_in):
        bound = 1.0 / jnp.sqrt(jnp.float32(fan_in))
        return jax.random.uniform(k, shape, jnp.float32, -bound, bound)

    names_shapes_fanin = [
        ("w_ir", (MSG, HID), HID), ("w_iz", (MSG, HID), HID), ("w_in", (MSG, HID), HID),
        ("w_hr", (HID, HID), HID), ("w_hz", (HID, HID), HID), ("w_hn", (HID, HID), HID),
        ("b_ir", (1, HID), HID), ("b_iz", (1, HID), HID), ("b_in", (1, HID), HID),
        ("b_hr", (1, HID), HID), ("b_hz", (1, HID), HID), ("b_hn", (1, HID), HID),
        ("w_stop", (HID, STOP), HID), ("b_stop", (1, STOP), HID),
        ("w_y1", (HID + DESC_DIM, HID), HID + DESC_DIM), ("b_y1", (1, HID), HID + DESC_DIM),
        ("w_y2", (HID, SCORE), HID), ("b_y2", (1, SCORE), HID),
        ("w_state", (HID, HID), HID), ("b_state", (1, HID), HID),
        ("w_desc", (DESC_DIM, HID), DESC_DIM),
        ("w_msg", (HID, MSG), HID), ("b_msg", (1, MSG), HID),
    ]
    keys = jax.random.split(key, len(names_shapes_fanin))
    return {name: uniform(k, shape, fan)
            for k, (name, shape, fan) in zip(keys, names_shapes_fanin)}


# ----------------------------- main ----------------------------------------------
if __name__ == "__main__":
    root = jax.random.PRNGKey(0)
    k_param, k_msg, k_state, k_img, k_desc, k_seq = jax.random.split(root, 6)

    raw = init_params(k_param)
    params = prepare_params(raw)

    message = jax.random.normal(k_msg, (B, MSG), jnp.float32)
    state = jax.random.normal(k_state, (B, HID), jnp.float32)
    image = jax.random.normal(k_img, (B, 3, 8, 8), jnp.float32)   # unused, parity
    class_descriptors = jax.random.normal(k_desc, (N_DESC, DESC_DIM), jnp.float32)

    # ---- single step (torch Receiver.forward, eval mode) ----
    fwd = jax.jit(functools.partial(receiver_forward, params))
    (sb, sd), (mb, md), y, ns = fwd(message, state, image, class_descriptors)
    jax.block_until_ready((sb, sd, mb, md, y, ns))

    (rsb, rsd), (rmb, rmd), ry, rns = receiver_reference(raw, message, state, class_descriptors)
    assert ns.shape == (B, HID) and sd.shape == (B, STOP)
    assert md.shape == (B, MSG) and y.shape == (B, N_DESC * SCORE)
    assert bool(jnp.allclose(ns, rns, atol=1e-4, rtol=1e-4))
    assert bool(jnp.allclose(sd, rsd, atol=1e-4, rtol=1e-4))
    assert bool(jnp.allclose(md, rmd, atol=1e-4, rtol=1e-4))
    assert bool(jnp.allclose(y, ry, atol=1e-4, rtol=1e-4))
    assert bool(jnp.all((sb == 0.0) | (sb == 1.0)))
    assert bool(jnp.all((mb == 0.0) | (mb == 1.0)))
    # bit parity away from the 0.5 threshold
    assert bool(jnp.all(jnp.where(jnp.abs(rsd - 0.5) > 1e-3, sb == rsb, True)))
    assert bool(jnp.all(jnp.where(jnp.abs(rmd - 0.5) > 1e-3, mb == rmb, True)))

    # ---- T recurrent steps fused into ONE kernel launch ----
    T = 6
    messages = jax.random.normal(k_seq, (T, B, MSG), jnp.float32)
    seq = jax.jit(functools.partial(receiver_forward_seq, params))
    (sb_t, sd_t), (mb_t, md_t), y_t, ns_t = seq(messages, state, class_descriptors)
    jax.block_until_ready(ns_t)

    h_ref = state
    for t in range(T):
        (_, _), (_, _), ry_t, h_ref = receiver_reference(raw, messages[t], h_ref, class_descriptors)
    assert ns_t.shape == (T, B, HID)
    assert bool(jnp.allclose(ns_t[-1], h_ref, atol=1e-3, rtol=1e-3))
    assert bool(jnp.allclose(y_t[-1], ry_t, atol=1e-3, rtol=1e-3))
    assert all(bool(jnp.all(jnp.isfinite(a))) for a in (sd_t, md_t, y_t, ns_t))

    print("KERNEL_OK")
</pallas_src>

<mosaic_0001>
module attributes {stable_mosaic.version = 11 : i64} {
  func.func @receiver_seq_kernel(%arg0: i32, %arg1: memref<1x2x16xf32, #tpu.memory_space<vmem>>, %arg2: memref<2x32xf32, #tpu.memory_space<vmem>>, %arg3: memref<8x32xf32, #tpu.memory_space<vmem>>, %arg4: memref<40x1024xf32, #tpu.memory_space<vmem>>, %arg5: memref<1x2x128xf32, #tpu.memory_space<vmem>>, %arg6: memref<2x32xf32, #tpu.memory_space<vmem>>, %arg7: memref<1x128xf32, #tpu.memory_space<vmem>>) attributes {dimension_semantics = [#tpu.dimension_semantics<arbitrary>], iteration_bounds = array<i64: 1>, scalar_prefetch = 0 : i64, scratch_operands = 2 : i64, tpu.core_type = #tpu.core_type<tc>, window_params = [{transform_indices = @transform_0, window_bounds = array<i64: 1, 2, 16>}, {pipeline_mode = #tpu.pipeline_mode<synchronous>, transform_indices = @transform_1, window_bounds = array<i64: 2, 32>}, {pipeline_mode = #tpu.pipeline_mode<synchronous>, transform_indices = @transform_2, window_bounds = array<i64: 8, 32>}, {pipeline_mode = #tpu.pipeline_mode<synchronous>, transform_indices = @transform_3, window_bounds = array<i64: 40, 1024>}, {transform_indices = @transform_4, window_bounds = array<i64: 1, 2, 128>}]} {
    %c0_i32 = arith.constant 0 : i32
    %0 = arith.cmpi eq, %arg0, %c0_i32 : i32
    %1 = arith.extui %0 : i1 to i32
    %c0_i32_0 = arith.constant 0 : i32
    %2 = arith.cmpi ne, %1, %c0_i32_0 : i32
    scf.if %2 {
      %c0_66 = arith.constant 0 : index
      %c0_67 = arith.constant 0 : index
      %133 = vector.load %arg2[%c0_66, %c0_67] : memref<2x32xf32, #tpu.memory_space<vmem>>, vector<2x32xf32>
      %c0_68 = arith.constant 0 : index
      %c0_69 = arith.constant 0 : index
      %134 = vector.load %arg6[%c0_68, %c0_69] : memref<2x32xf32, #tpu.memory_space<vmem>>, vector<2x32xf32>
      tpu.vector_store %arg6[%c0_68, %c0_69], %133 {strides = array<i32>} : memref<2x32xf32, #tpu.memory_space<vmem>>, vector<2x32xf32>,
      %c4 = arith.constant 4 : index
      %c0_70 = arith.constant 0 : index
      %135 = vector.load %arg3[%c4, %c0_70] : memref<8x32xf32, #tpu.memory_space<vmem>>, vector<1x32xf32>
      %c0_71 = arith.constant 0 : index
      %c512 = arith.constant 512 : index
      %136 = vector.load %arg4[%c0_71, %c512] : memref<40x1024xf32, #tpu.memory_space<vmem>>, vector<32x128xf32>
      %cst_72 = arith.constant dense<0.000000e+00> : vector<1x128xf32>
      %137 = tpu.matmul %135, %136, %cst_72 {dimension_numbers = #tpu.dot_dimension_numbers<[1], [0], [0], [1], [0, 0, 1, 1], [], []>} : vector<1x32xf32>, vector<32x128xf32>, vector<1x128xf32> -> vector<1x128xf32>
      %c0_73 = arith.constant 0 : index
      %c0_74 = arith.constant 0 : index
      %138 = vector.load %arg7[%c0_73, %c0_74] : memref<1x128xf32, #tpu.memory_space<vmem>>, vector<1x128xf32>
      tpu.vector_store %arg7[%c0_73, %c0_74], %137 {strides = array<i32>} : memref<1x128xf32, #tpu.memory_space<vmem>>, vector<1x128xf32>,
    } else {
    }
    %c0 = arith.constant 0 : index
    %c0_1 = arith.constant 0 : index
    %c0_2 = arith.constant 0 : index
    %3 = vector.load %arg1[%c0, %c0_1, %c0_2] : memref<1x2x16xf32, #tpu.memory_space<vmem>>, vector<1x2x16xf32>
    %4 = vector.shape_cast %3 : vector<1x2x16xf32> to vector<2x16xf32>
    %c0_3 = arith.constant 0 : index
    %c0_4 = arith.constant 0 : index
    %5 = vector.load %arg6[%c0_3, %c0_4] : memref<2x32xf32, #tpu.memory_space<vmem>>, vector<2x32xf32>
    %c0_5 = arith.constant 0 : index
    %c0_6 = arith.constant 0 : index
    %6 = vector.load %arg4[%c0_5, %c0_6] : memref<40x1024xf32, #tpu.memory_space<vmem>>, vector<16x128xf32>
    %cst = arith.constant dense<0.000000e+00> : vector<2x128xf32>
    %7 = tpu.matmul %4, %6, %cst {dimension_numbers = #tpu.dot_dimension_numbers<[1], [0], [0], [1], [0, 0, 1, 1], [], []>} : vector<2x16xf32>, vector<16x128xf32>, vector<2x128xf32> -> vector<2x128xf32>
    %c32 = arith.constant 32 : index
    %c0_7 = arith.constant 0 : index
    %8 = vector.load %arg4[%c32, %c0_7] : memref<40x1024xf32, #tpu.memory_space<vmem>>, vector<1x128xf32>
    %9 = vector.broadcast %8 : vector<1x128xf32> to vector<2x128xf32>
    %10 = arith.addf %7, %9 : vector<2x128xf32>
    %c0_8 = arith.constant 0 : index
    %c128 = arith.constant 128 : index
    %11 = vector.load %arg4[%c0_8, %c128] : memref<40x1024xf32, #tpu.memory_space<vmem>>, vector<32x128xf32>
    %cst_9 = arith.constant dense<0.000000e+00> : vector<2x128xf32>
    %12 = tpu.matmul %5, %11, %cst_9 {dimension_numbers = #tpu.dot_dimension_numbers<[1], [0], [0], [1], [0, 0, 1, 1], [], []>} : vector<2x32xf32>, vector<32x128xf32>, vector<2x128xf32> -> vector<2x128xf32>
    %c32_10 = arith.constant 32 : index
    %c128_11 = arith.constant 128 : index
    %13 = vector.load %arg4[%c32_10, %c128_11] : memref<40x1024xf32, #tpu.memory_space<vmem>>, vector<1x128xf32>
    %14 = vector.broadcast %13 : vector<1x128xf32> to vector<2x128xf32>
    %15 = arith.addf %12, %14 : vector<2x128xf32>
    %16 = vector.extract_strided_slice %10 {offsets = [0, 32], sizes = [2, 32], strides = [1, 1]} : vector<2x128xf32> to vector<2x32xf32>
    %17 = vector.extract_strided_slice %15 {offsets = [0, 32], sizes = [2, 32], strides = [1, 1]} : vector<2x128xf32> to vector<2x32xf32>
    %18 = arith.addf %16, %17 : vector<2x32xf32>
    %cst_12 = arith.constant 0.000000e+00 : f32
    %19 = vector.broadcast %cst_12 : f32 to vector<2x32xf32>
    %20 = arith.subf %19, %18 : vector<2x32xf32>
    %21 = math.exp %20 : vector<2x32xf32>
    %cst_13 = arith.constant 1.000000e+00 : f32
    %22 = vector.broadcast %cst_13 : f32 to vector<2x32xf32>
    %23 = arith.addf %22, %21 : vector<2x32xf32>
    %cst_14 = arith.constant 1.000000e+00 : f32
    %24 = vector.broadcast %cst_14 : f32 to vector<2x32xf32>
    %25 = arith.divf %24, %23 : vector<2x32xf32>
    %26 = vector.extract_strided_slice %10 {offsets = [0, 64], sizes = [2, 32], strides = [1, 1]} : vector<2x128xf32> to vector<2x32xf32>
    %27 = vector.extract_strided_slice %15 {offsets = [0, 64], sizes = [2, 32], strides = [1, 1]} : vector<2x128xf32> to vector<2x32xf32>
    %28 = arith.addf %26, %27 : vector<2x32xf32>
    %cst_15 = arith.constant 0.000000e+00 : f32
    %29 = vector.broadcast %cst_15 : f32 to vector<2x32xf32>
    %30 = arith.subf %29, %28 : vector<2x32xf32>
    %31 = math.exp %30 : vector<2x32xf32>
    %cst_16 = arith.constant 1.000000e+00 : f32
    %32 = vector.broadcast %cst_16 : f32 to vector<2x32xf32>
    %33 = arith.addf %32, %31 : vector<2x32xf32>
    %cst_17 = arith.constant 1.000000e+00 : f32
    %34 = vector.broadcast %cst_17 : f32 to vector<2x32xf32>
    %35 = arith.divf %34, %33 : vector<2x32xf32>
    %36 = vector.extract_strided_slice %10 {offsets = [0, 0], sizes = [2, 32], strides = [1, 1]} : vector<2x128xf32> to vector<2x32xf32>
    %37 = vector.extract_strided_slice %15 {offsets = [0, 0], sizes = [2, 32], strides = [1, 1]} : vector<2x128xf32> to vector<2x32xf32>
    %38 = arith.mulf %25, %37 : vector<2x32xf32>
    %39 = arith.addf %36, %38 : vector<2x32xf32>
    %40 = math.tanh %39 : vector<2x32xf32>
    %cst_18 = arith.constant 1.000000e+00 : f32
    %41 = vector.broadcast %cst_18 : f32 to vector<2x32xf32>
    %42 = arith.subf %41, %35 : vector<2x32xf32>
    %43 = arith.mulf %42, %40 : vector<2x32xf32>
    %44 = arith.mulf %35, %5 : vector<2x32xf32>
    %45 = arith.addf %43, %44 : vector<2x32xf32>
    %c0_19 = arith.constant 0 : index
    %c0_20 = arith.constant 0 : index
    %46 = vector.load %arg6[%c0_19, %c0_20] : memref<2x32xf32, #tpu.memory_space<vmem>>, vector<2x32xf32>
    tpu.vector_store %arg6[%c0_19, %c0_20], %45 {strides = array<i32>} : memref<2x32xf32, #tpu.memory_space<vmem>>, vector<2x32xf32>,
    %c0_21 = arith.constant 0 : index
    %c256 = arith.constant 256 : index
    %47 = vector.load %arg4[%c0_21, %c256] : memref<40x1024xf32, #tpu.memory_space<vmem>>, vector<32x256xf32>
    %cst_22 = arith.constant dense<0.000000e+00> : vector<2x256xf32>
    %48 = tpu.matmul %45, %47, %cst_22 {dimension_numbers = #tpu.dot_dimension_numbers<[1], [0], [0], [1], [0, 0, 1, 1], [], []>} : vector<2x32xf32>, vector<32x256xf32>, vector<2x256xf32> -> vector<2x256xf32>
    %c32_23 = arith.constant 32 : index
    %c256_24 = arith.constant 256 : index
    %49 = vector.load %arg4[%c32_23, %c256_24] : memref<40x1024xf32, #tpu.memory_space<vmem>>, vector<1x256xf32>
    %50 = vector.broadcast %49 : vector<1x256xf32> to vector<2x256xf32>
    %51 = arith.addf %48, %50 : vector<2x256xf32>
    %52 = vector.extract_strided_slice %51 {offsets = [0, 0], sizes = [2, 128], strides = [1, 1]} : vector<2x256xf32> to vector<2x128xf32>
    %c0_25 = arith.constant 0 : index
    %c0_26 = arith.constant 0 : index
    %53 = vector.load %arg7[%c0_25, %c0_26] : memref<1x128xf32, #tpu.memory_space<vmem>>, vector<1x128xf32>
    %54 = vector.broadcast %53 : vector<1x128xf32> to vector<2x128xf32>
    %55 = arith.addf %52, %54 : vector<2x128xf32>
    %cst_27 = arith.constant 0.000000e+00 : f32
    %56 = vector.broadcast %cst_27 : f32 to vector<2x128xf32>
    %57 = arith.maximumf %55, %56 : vector<2x128xf32>
    %58 = vector.extract_strided_slice %51 {offsets = [0, 128], sizes = [2, 32], strides = [1, 1]} : vector<2x256xf32> to vector<2x32xf32>
    %59 = vector.extract_strided_slice %51 {offsets = [0, 160], sizes = [2, 1], strides = [1, 1]} : vector<2x256xf32> to vector<2x1xf32>
    %cst_28 = arith.constant 0.000000e+00 : f32
    %60 = vector.broadcast %cst_28 : f32 to vector<2x1xf32>
    %61 = arith.subf %60, %59 : vector<2x1xf32>
    %62 = math.exp %61 : vector<2x1xf32>
    %cst_29 = arith.constant 1.000000e+00 : f32
    %63 = vector.broadcast %cst_29 : f32 to vector<2x1xf32>
    %64 = arith.addf %63, %62 : vector<2x1xf32>
    %cst_30 = arith.constant 1.000000e+00 : f32
    %65 = vector.broadcast %cst_30 : f32 to vector<2x1xf32>
    %66 = arith.divf %65, %64 : vector<2x1xf32>
    %67 = math.roundeven %66 : vector<2x1xf32>
    %c0_31 = arith.constant 0 : index
    %c640 = arith.constant 640 : index
    %68 = vector.load %arg4[%c0_31, %c640] : memref<40x1024xf32, #tpu.memory_space<vmem>>, vector<1x128xf32>
    %69 = vector.broadcast %68 : vector<1x128xf32> to vector<2x128xf32>
    %70 = arith.mulf %57, %69 : vector<2x128xf32>
    %71 = vector.extract_strided_slice %70 {offsets = [0, 0], sizes = [2, 32], strides = [1, 1]} : vector<2x128xf32> to vector<2x32xf32>
    %cst_32 = arith.constant dense<0.000000e+00> : vector<2xf32>
    %72 = vector.multi_reduction <add>, %71, %cst_32 [1] : vector<2x32xf32> to vector<2xf32>
    %73 = vector.shape_cast %72 : vector<2xf32> to vector<2x1xf32>
    %74 = vector.extract_strided_slice %70 {offsets = [0, 32], sizes = [2, 32], strides = [1, 1]} : vector<2x128xf32> to vector<2x32xf32>
    %cst_33 = arith.constant dense<0.000000e+00> : vector<2xf32>
    %75 = vector.multi_reduction <add>, %74, %cst_33 [1] : vector<2x32xf32> to vector<2xf32>
    %76 = vector.shape_cast %75 : vector<2xf32> to vector<2x1xf32>
    %77 = vector.extract_strided_slice %70 {offsets = [0, 64], sizes = [2, 32], strides = [1, 1]} : vector<2x128xf32> to vector<2x32xf32>
    %cst_34 = arith.constant dense<0.000000e+00> : vector<2xf32>
    %78 = vector.multi_reduction <add>, %77, %cst_34 [1] : vector<2x32xf32> to vector<2xf32>
    %79 = vector.shape_cast %78 : vector<2xf32> to vector<2x1xf32>
    %80 = vector.extract_strided_slice %70 {offsets = [0, 96], sizes = [2, 32], strides = [1, 1]} : vector<2x128xf32> to vector<2x32xf32>
    %cst_35 = arith.constant dense<0.000000e+00> : vector<2xf32>
    %81 = vector.multi_reduction <add>, %80, %cst_35 [1] : vector<2x32xf32> to vector<2xf32>
    %82 = vector.shape_cast %81 : vector<2xf32> to vector<2x1xf32>
    %83 = tpu.concatenate %73, %76, %79, %82 in 1 : vector<2x1xf32>, vector<2x1xf32>, vector<2x1xf32>, vector<2x1xf32> -> vector<2x4xf32>
    %c32_36 = arith.constant 32 : index
    %c640_37 = arith.constant 640 : index
    %84 = vector.load %arg4[%c32_36, %c640_37] : memref<40x1024xf32, #tpu.memory_space<vmem>>, vector<1x4xf32>
    %85 = vector.broadcast %84 : vector<1x4xf32> to vector<2x4xf32>
    %86 = arith.addf %83, %85 : vector<2x4xf32>
    %cst_38 = arith.constant dense<0xFF800000> : vector<2xf32>
    %87 = vector.multi_reduction <maximumf>, %86, %cst_38 [1] : vector<2x4xf32> to vector<2xf32>
    %88 = vector.shape_cast %87 : vector<2xf32> to vector<2x1xf32>
    %89 = vector.broadcast %88 : vector<2x1xf32> to vector<2x4xf32>
    %90 = arith.subf %86, %89 : vector<2x4xf32>
    %91 = math.exp %90 : vector<2x4xf32>
    %cst_39 = arith.constant dense<0.000000e+00> : vector<2xf32>
    %92 = vector.multi_reduction <add>, %91, %cst_39 [1] : vector<2x4xf32> to vector<2xf32>
    %93 = vector.shape_cast %92 : vector<2xf32> to vector<2x1xf32>
    %94 = vector.broadcast %93 : vector<2x1xf32> to vector<2x4xf32>
    %95 = arith.divf %91, %94 : vector<2x4xf32>
    %c0_40 = arith.constant 0 : index
    %c0_41 = arith.constant 0 : index
    %96 = vector.load %arg3[%c0_40, %c0_41] : memref<8x32xf32, #tpu.memory_space<vmem>>, vector<4x8xf32>
    %cst_42 = arith.constant dense<0.000000e+00> : vector<2x8xf32>
    %97 = tpu.matmul %95, %96, %cst_42 {dimension_numbers = #tpu.dot_dimension_numbers<[1], [0], [0], [1], [0, 0, 1, 1], [], []>} : vector<2x4xf32>, vector<4x8xf32>, vector<2x8xf32> -> vector<2x8xf32>
    %c0_43 = arith.constant 0 : index
    %c768 = arith.constant 768 : index
    %98 = vector.load %arg4[%c0_43, %c768] : memref<40x1024xf32, #tpu.memory_space<vmem>>, vector<8x32xf32>
    %cst_44 = arith.constant dense<0.000000e+00> : vector<2x32xf32>
    %99 = tpu.matmul %97, %98, %cst_44 {dimension_numbers = #tpu.dot_dimension_numbers<[1], [0], [0], [1], [0, 0, 1, 1], [], []>} : vector<2x8xf32>, vector<8x32xf32>, vector<2x32xf32> -> vector<2x32xf32>
    %100 = arith.addf %58, %99 : vector<2x32xf32>
    %101 = math.tanh %100 : vector<2x32xf32>
    %c0_45 = arith.constant 0 : index
    %c896 = arith.constant 896 : index
    %102 = vector.load %arg4[%c0_45, %c896] : memref<40x1024xf32, #tpu.memory_space<vmem>>, vector<32x16xf32>
    %cst_46 = arith.constant dense<0.000000e+00> : vector<2x16xf32>
    %103 = tpu.matmul %101, %102, %cst_46 {dimension_numbers = #tpu.dot_dimension_numbers<[1], [0], [0], [1], [0, 0, 1, 1], [], []>} : vector<2x32xf32>, vector<32x16xf32>, vector<2x16xf32> -> vector<2x16xf32>
    %c32_47 = arith.constant 32 : index
    %c896_48 = arith.constant 896 : index
    %104 = vector.load %arg4[%c32_47, %c896_48] : memref<40x1024xf32, #tpu.memory_space<vmem>>, vector<1x16xf32>
    %105 = vector.broadcast %104 : vector<1x16xf32> to vector<2x16xf32>
    %106 = arith.addf %103, %105 : vector<2x16xf32>
    %cst_49 = arith.constant 0.000000e+00 : f32
    %107 = vector.broadcast %cst_49 : f32 to vector<2x16xf32>
    %108 = arith.subf %107, %106 : vector<2x16xf32>
    %109 = math.exp %108 : vector<2x16xf32>
    %cst_50 = arith.constant 1.000000e+00 : f32
    %110 = vector.broadcast %cst_50 : f32 to vector<2x16xf32>
    %111 = arith.addf %110, %109 : vector<2x16xf32>
    %cst_51 = arith.constant 1.000000e+00 : f32
    %112 = vector.broadcast %cst_51 : f32 to vector<2x16xf32>
    %113 = arith.divf %112, %111 : vector<2x16xf32>
    %114 = math.roundeven %113 : vector<2x16xf32>
    %c0_52 = arith.constant 0 : index
    %c0_53 = arith.constant 0 : index
    %c0_54 = arith.constant 0 : index
    %115 = vector.load %arg5[%c0_52, %c0_53, %c0_54] : memref<1x2x128xf32, #tpu.memory_space<vmem>>, vector<1x2x32xf32>
    %116 = vector.shape_cast %115 : vector<1x2x32xf32> to vector<2x32xf32>
    %117 = vector.shape_cast %45 : vector<2x32xf32> to vector<1x2x32xf32>
    tpu.vector_store %arg5[%c0_52, %c0_53, %c0_54], %117 {strides = array<i32>} : memref<1x2x128xf32, #tpu.memory_space<vmem>>, vector<1x2x32xf32>,
    %c0_55 = arith.constant 0 : index
    %c0_56 = arith.constant 0 : index
    %c32_57 = arith.constant 32 : index
    %118 = vector.load %arg5[%c0_55, %c0_56, %c32_57] : memref<1x2x128xf32, #tpu.memory_space<vmem>>, vector<1x2x16xf32>
    %119 = vector.shape_cast %118 : vector<1x2x16xf32> to vector<2x16xf32>
    %120 = vector.shape_cast %113 : vector<2x16xf32> to vector<1x2x16xf32>
    tpu.vector_store %arg5[%c0_55, %c0_56, %c32_57], %120 {strides = array<i32>} : memref<1x2x128xf32, #tpu.memory_space<vmem>>, vector<1x2x16xf32>,
    %c0_58 = arith.constant 0 : index
    %c0_59 = arith.constant 0 : index
    %c48 = arith.constant 48 : index
    %121 = vector.load %arg5[%c0_58, %c0_59, %c48] : memref<1x2x128xf32, #tpu.memory_space<vmem>>, vector<1x2x16xf32>
    %122 = vector.shape_cast %121 : vector<1x2x16xf32> to vector<2x16xf32>
    %123 = vector.shape_cast %114 : vector<2x16xf32> to vector<1x2x16xf32>
    tpu.vector_store %arg5[%c0_58, %c0_59, %c48], %123 {strides = array<i32>} : memref<1x2x128xf32, #tpu.memory_space<vmem>>, vector<1x2x16xf32>,
    %c0_60 = arith.constant 0 : index
    %c0_61 = arith.constant 0 : index
    %c64 = arith.constant 64 : index
    %124 = vector.load %arg5[%c0_60, %c0_61, %c64] : memref<1x2x128xf32, #tpu.memory_space<vmem>>, vector<1x2x4xf32>
    %125 = vector.shape_cast %124 : vector<1x2x4xf32> to vector<2x4xf32>
    %126 = vector.shape_cast %86 : vector<2x4xf32> to vector<1x2x4xf32>
    tpu.vector_store %arg5[%c0_60, %c0_61, %c64], %126 {strides = array<i32>} : memref<1x2x128xf32, #tpu.memory_space<vmem>>, vector<1x2x4xf32>,
    %c0_62 = arith.constant 0 : index
    %c0_63 = arith.constant 0 : index
    %c68 = arith.constant 68 : index
    %127 = vector.load %arg5[%c0_62, %c0_63, %c68] : memref<1x2x128xf32, #tpu.memory_space<vmem>>, vector<1x2x1xf32>
    %128 = vector.shape_cast %127 : vector<1x2x1xf32> to vector<2x1xf32>
    %129 = vector.shape_cast %66 : vector<2x1xf32> to vector<1x2x1xf32>
    tpu.vector_store %arg5[%c0_62, %c0_63, %c68], %129 {strides = array<i32>} : memref<1x2x128xf32, #tpu.memory_space<vmem>>, vector<1x2x1xf32>,
    %c0_64 = arith.constant 0 : index
    %c0_65 = arith.constant 0 : index
    %c69 = arith.constant 69 : index
    %130 = vector.load %arg5[%c0_64, %c0_65, %c69] : memref<1x2x128xf32, #tpu.memory_space<vmem>>, vector<1x2x1xf32>
    %131 = vector.shape_cast %130 : vector<1x2x1xf32> to vector<2x1xf32>
    %132 = vector.shape_cast %67 : vector<2x1xf32> to vector<1x2x1xf32>
    tpu.vector_store %arg5[%c0_64, %c0_65, %c69], %132 {strides = array<i32>} : memref<1x2x128xf32, #tpu.memory_space<vmem>>, vector<1x2x1xf32>,
    return
  }
  func.func @transform_0(%arg0: i32) -> (i32, i32, i32) {
    %c0_i32 = arith.constant 0 : i32
    %c0_i32_0 = arith.constant 0 : i32
    %c0_i32_1 = arith.constant 0 : i32
    return %arg0, %c0_i32, %c0_i32_0 : i32, i32, i32
  }
  func.func @transform_1(%arg0: i32) -> (i32, i32) {
    %c0_i32 = arith.constant 0 : i32
    %c0_i32_0 = arith.constant 0 : i32
    %c0_i32_1 = arith.constant 0 : i32
    return %c0_i32, %c0_i32_0 : i32, i32
  }
  func.func @transform_2(%arg0: i32) -> (i32, i32) {
    %c0_i32 = arith.constant 0 : i32
    %c0_i32_0 = arith.constant 0 : i32
    %c0_i32_1 = arith.constant 0 : i32
    return %c0_i32, %c0_i32_0 : i32, i32
  }
  func.func @transform_3(%arg0: i32) -> (i32, i32) {
    %c0_i32 = arith.constant 0 : i32
    %c0_i32_0 = arith.constant 0 : i32
    %c0_i32_1 = arith.constant 0 : i32
    return %c0_i32, %c0_i32_0 : i32, i32
  }
  func.func @transform_4(%arg0: i32) -> (i32, i32, i32) {
    %c0_i32 = arith.constant 0 : i32
    %c0_i32_0 = arith.constant 0 : i32
    %c0_i32_1 = arith.constant 0 : i32
    return %arg0, %c0_i32, %c0_i32_0 : i32, i32, i32
  }
}

</mosaic_0001>

<llo_original>
// kernel: receiver_forward.1
$region0: #{receiver_forward.1}
  #allocation0 [shape = 'u32[]', space=smem, size = 0x4, offset = 0x4, fixed_abs, tag = 'smem constant byte address 0x4 - core index']
  #allocation1 [shape = 'u32[72,128]{1,0:T(1,128)}', space=vmem, size = 0x9000, scoped, tag = 'internal scratch']
  #allocation2 [shape = 'f32[2,32]{1,0:T(2,128)}', space=vmem, size = 0x400, scoped, tag = 'scratch operand']
  #allocation3 [shape = 'f32[1,128]{1,0:T(1,128)}', space=vmem, size = 0x200, scoped, tag = 'scratch operand']
  %s0 = inlined_call_operand.vmem [shape: f32[1,2,16], index: 0, kind: input, shape index: {}]
  %s1 = inlined_call_operand.vmem [shape: f32[2,32], index: 1, kind: input, shape index: {}]
  %s2 = inlined_call_operand.vmem [shape: f32[8,32], index: 2, kind: input, shape index: {}]
  %s3 = inlined_call_operand.hbm [shape: f32[40,1024], index: 3, kind: input, shape index: {}]
  %s4 = inlined_call_operand.vmem [shape: f32[1,2,128], index: 4, kind: output, shape index: {}]
  %s5 = sld [smem:[#allocation0]]
  $region34: #{receiver_forward.1} parent=0
    _
  %s7 = ssub.s32 1, %s5
  %s8 = scalar_select 0, %s7, %s5
  $region1: #{receiver_forward.1} parent=0
    #allocation4 [shape = 'u8[163840]{0}', space=vmem, size = 0x28000, scoped, tag = 'input window, operand 3, single buffered']
    #allocation5 [shape = 's32[1]{0}', space=sflag, size = 0x4, scoped, tag = 'scoped memory for receiver_forward.1']
    %9 = vsyncpa [#allocation5], 0
    // Predicated region
    $region2: #{receiver_forward.1} parent=1 // pred_check
      _
    $region3: #{receiver_forward.1} parent=1 // pred_check_branch
      %11 = sbr.rel (0) target = $region5
    $region4: #{receiver_forward.1} parent=1 // pred_region
      _
    $region5: #{receiver_forward.1} parent=1 // pred_fallthru
      _
    // Predicated region
    $region6: #{receiver_forward.1} parent=1 // pred_check
      _
    $region7: #{receiver_forward.1} parent=1 // pred_check_branch
      %13 = sbr.rel (0) target = $region9
    $region8: #{receiver_forward.1} parent=1 // pred_region
      _
    $region9: #{receiver_forward.1} parent=1 // pred_fallthru
      _
    // Predicated region
    $region10: #{receiver_forward.1} parent=1 // pred_check
      _
    $region11: #{receiver_forward.1} parent=1 // pred_check_branch
      %15 = sbr.rel (0) target = $region13
    $region12: #{receiver_forward.1} parent=1 // pred_region
      _
    $region13: #{receiver_forward.1} parent=1 // pred_fallthru
      _
    // Predicated region
    $region14: #{receiver_forward.1} parent=1 // pred_check
      _
    $region15: #{receiver_forward.1} parent=1 // pred_check_branch
      %17 = sbr.rel (0) target = $region17
    $region16: #{receiver_forward.1} parent=1 // pred_region
      %19 = vsyncadd [#allocation5], 0
      %s20 = sshll.u32 %s3, 4
      %s21 = int_to_ptr.hbm [resolvable:$true] %s20
      %s22 = sshll.u32 [#allocation4], 4
      %s23 = int_to_ptr.vmem [resolvable:$true] %s22
      %28 = dma.hbm_to_vmem [thread:$0]  %s21, 5120, %s23, [#allocation5], 1024, 1024, 64
    $region17: #{receiver_forward.1} parent=1 // pred_fallthru
      _
    // Predicated region
    $region18: #{receiver_forward.1} parent=1 // pred_check
      _
    $region19: #{receiver_forward.1} parent=1 // pred_check_branch
      %30 = sbr.rel (0) target = $region21
    $region20: #{receiver_forward.1} parent=1 // pred_region
      %32 = dma.done [#allocation5], 5120
    $region21: #{receiver_forward.1} parent=1 // pred_fallthru
      _
    %p33 = scmp.eq.s32.totalorder 0, 0
    // Predicated region
    $region22: #{receiver_forward.1} parent=1 // pred_check
      %p34 = pneg %p33
    $region23: #{receiver_forward.1} parent=1 // pred_check_branch
      %36 = sbr.rel (%p34) target = $region25
    $region24: #{receiver_forward.1} parent=1 // pred_region
      %v37 = vld [vmem:[%s1] sm:$0x3]
      %vm38 = vcmask 254976
      %39 = vst.msk [vmem:[#allocation2] sm:$0x3] %vm38, %v37
      %v40 = vld [vmem:[%s2 + $0x4] sm:$0x1]
      %v41 = vld [vmem:[#allocation4 + $0x20] sm:$0xff]
      %v42 = vld [vmem:[#allocation4 + $0x60] sm:$0xff]
      %v43 = vld [vmem:[#allocation4 + $0xa0] sm:$0xff]
      %v44 = vld [vmem:[#allocation4 + $0xe0] sm:$0xff]
      %vm45 = vcmask 261120
      %v47 = vsel %vm45, %v40, 0
      %49 = vmatpush.msra.mxu0 0.0
      %50 = vmatpush.msra.mxu0 0.0
      %51 = vmatpush.msra.mxu0 0.0
      %52 = vmatpush.msra.mxu0 0.0
      %53 = vmatpush.msra.mxu0 0.0
      %54 = vmatpush.msra.mxu0 0.0
      %55 = vmatpush.msra.mxu0 0.0
      %56 = vmatpush.msra.mxu0 0.0
      %57 = vmatpush.msra.mxu0 0.0
      %58 = vmatpush.msra.mxu0 0.0
      %59 = vmatpush.msra.mxu0 0.0
      %60 = vmatpush.msra.mxu0 0.0
      %61 = vmatpush.msra.mxu0 %v44
      %62 = vmatpush.msra.mxu0 %v43
      %63 = vmatpush.msra.mxu0 %v42
      %64 = vmatpush.msra.mxu0 %v41
      %65 = vmatmul.f32.gmra.mxu0 %v47
      %v66 = vpop.f32.mrf.mxu0
      %v67 = vadd.f32 0.0, %v66
      %68 = vdwg.mxu0
      %69 = vst [vmem:[#allocation3] sm:$0x1] %v67
    $region25: #{receiver_forward.1} parent=1 // pred_fallthru
      _
    %v70 = vld [vmem:[%s0] sm:$0x3]
    %v71 = vld [vmem:[#allocation2] sm:$0x3]
    %v72 = vld [vmem:[#allocation4] sm:$0xff]
    %v73 = vld [vmem:[#allocation4 + $0x40] sm:$0xff]
    %v74 = vld [vmem:[#allocation4 + $0x100] ss:$0 sm:$0xff]
    %vm75 = vcmask 130048
    %v77 = vsel %vm75, %v70, 0
    %79 = vmatpush.msra.mxu0 0.0
    %80 = vmatpush.msra.mxu0 0.0
    %81 = vmatpush.msra.mxu0 0.0
    %82 = vmatpush.msra.mxu0 0.0
    %83 = vmatpush.msra.mxu0 0.0
    %84 = vmatpush.msra.mxu0 0.0
    %85 = vmatpush.msra.mxu0 0.0
    %86 = vmatpush.msra.mxu0 0.0
    %87 = vmatpush.msra.mxu0 0.0
    %88 = vmatpush.msra.mxu0 0.0
    %89 = vmatpush.msra.mxu0 0.0
    %90 = vmatpush.msra.mxu0 0.0
    %91 = vmatpush.msra.mxu0 0.0
    %92 = vmatpush.msra.mxu0 0.0
    %93 = vmatpush.msra.mxu0 %v73
    %94 = vmatpush.msra.mxu0 %v72
    %95 = vmatmul.f32.gmra.mxu0 %v77
    %v96 = vpop.f32.mrf.mxu0
    %v97 = vadd.f32 %v74, %v96
    %98 = vdwg.mxu0
    %v99 = vld [vmem:[#allocation4 + $0x8] sm:$0xff]
    %v100 = vld [vmem:[#allocation4 + $0x48] sm:$0xff]
    %v101 = vld [vmem:[#allocation4 + $0x88] sm:$0xff]
    %v102 = vld [vmem:[#allocation4 + $0xc8] sm:$0xff]
    %v103 = vld [vmem:[#allocation4 + $0x108] ss:$0 sm:$0xff]
    %vm104 = vcmask 261120
    %v106 = vsel %vm104, %v71, 0
    %108 = vmatpush.msra.mxu0 0.0
    %109 = vmatpush.msra.mxu0 0.0
    %110 = vmatpush.msra.mxu0 0.0
    %111 = vmatpush.msra.mxu0 0.0
    %112 = vmatpush.msra.mxu0 0.0
    %113 = vmatpush.msra.mxu0 0.0
    %114 = vmatpush.msra.mxu0 0.0
    %115 = vmatpush.msra.mxu0 0.0
    %116 = vmatpush.msra.mxu0 0.0
    %117 = vmatpush.msra.mxu0 0.0
    %118 = vmatpush.msra.mxu0 0.0
    %119 = vmatpush.msra.mxu0 0.0
    %120 = vmatpush.msra.mxu0 %v102
    %121 = vmatpush.msra.mxu0 %v101
    %122 = vmatpush.msra.mxu0 %v100
    %123 = vmatpush.msra.mxu0 %v99
    %124 = vmatmul.f32.gmra.mxu0 %v106
    %v125 = vpop.f32.mrf.mxu0
    %v126 = vadd.f32 %v103, %v125
    %127 = vdwg.mxu0
    %v128 = vadd.f32 %v97, %v126
    %v129 = vsub.f32 0.0, %v128
    %v130 = vmul.f32 %v129, 1.442695
    %v131 = vpow.pop %v130
    %v132 = vadd.f32 %v131, 1.0
    %v133 = vrcp.pop %v132
    %v134 = vmul.f32 %v132, %v133
    %v135 = vsub.f32 1.0, %v134
    %v136 = vmul.f32 %v133, %v135
    %v137 = vadd.f32 %v133, %v136
    %vm138 = vweird.f32 %v132
    %vm139 = vweird.f32 %v133
    %vm140 = vmor %vm138, %vm139
    %v141 = vsel %vm140, %v133, %v137
    %v142 = vand.u32 2147483647, %v132
    %vm143 = vcmp.eq.f32.partialorder %v142, 8.507059e+37
    %v144 = vand.u32 %v132, 2147483648
    %v145 = vor.u32 1.1754944e-38, %v144
    %v146 = vsel %vm143, %v145, %v141
    %v147 = vmul.f32 1.0, %v146
    %149 = vrot.lane.b32.xlu0 %v126, 32
    %v150 = vpop.permute.xlu0 %149
    %v152 = vmul.f32 %v147, %v150
    %154 = vrot.lane.b32.xlu0 %v152, 96
    %v155 = vpop.permute.xlu0 %154
    %v157 = vadd.f32 %v97, %v155
    %v158 = vtanh.pop %v157
    %v159 = vsub.f32 1.0, %v147
    %161 = vrot.lane.b32.xlu0 %v158, 64
    %v162 = vpop.permute.xlu0 %161
    %v164 = vmul.f32 %v159, %v162
    %165 = vrot.lane.b32.xlu0 %v71, 64
    %v166 = vpop.permute.xlu0 %165
    %v168 = vmul.f32 %v147, %v166
    %v169 = vadd.f32 %v164, %v168
    %171 = vrot.lane.b32.xlu0 %v169, 64
    %v172 = vpop.permute.xlu0 %171
    %vm174 = vcmask 254976
    %175 = vst.msk [vmem:[#allocation2] sm:$0x3] %vm174, %v172
    %v176 = vld [vmem:[#allocation4 + $0x10] sm:$0xff]
    %v177 = vld [vmem:[#allocation4 + $0x18] sm:$0xff]
    %v178 = vld [vmem:[#allocation4 + $0x50] sm:$0xff]
    %v179 = vld [vmem:[#allocation4 + $0x58] sm:$0xff]
    %v180 = vld [vmem:[#allocation4 + $0x90] sm:$0xff]
    %v181 = vld [vmem:[#allocation4 + $0x98] sm:$0xff]
    %v182 = vld [vmem:[#allocation4 + $0xd0] sm:$0xff]
    %v183 = vld [vmem:[#allocation4 + $0xd8] sm:$0xff]
    %s184 = scalar_lea.vmem [#allocation4], 272
    %v185 = vld [vmem:[%s184] ss:$8 sm:$0x3]
    %v187 = vperm.slane %v185, 0
    %v188 = vperm.slane %v185, 1
    %v191 = vsel %vm104, %v172, 0
    %193 = vmatpush.msra.mxu0 0.0
    %194 = vmatpush.msra.mxu0 0.0
    %195 = vmatpush.msra.mxu0 0.0
    %196 = vmatpush.msra.mxu0 0.0
    %197 = vmatpush.msra.mxu0 0.0
    %198 = vmatpush.msra.mxu0 0.0
    %199 = vmatpush.msra.mxu0 0.0
    %200 = vmatpush.msra.mxu0 0.0
    %201 = vmatpush.msra.mxu0 0.0
    %202 = vmatpush.msra.mxu0 0.0
    %203 = vmatpush.msra.mxu0 0.0
    %204 = vmatpush.msra.mxu0 0.0
    %205 = vmatpush.msra.mxu0 %v182
    %206 = vmatpush.msra.mxu0 %v180
    %207 = vmatpush.msra.mxu0 %v178
    %208 = vmatpush.msra.mxu0 %v176
    %209 = vmatmul.f32.gmra.mxu0 %v191
    %v210 = vpop.f32.mrf.mxu0
    %v211 = vadd.f32 %v187, %v210
    %212 = vdwg.mxu0
    %213 = vmatpush.msra.mxu0 0.0
    %214 = vmatpush.msra.mxu0 0.0
    %215 = vmatpush.msra.mxu0 0.0
    %216 = vmatpush.msra.mxu0 0.0
    %217 = vmatpush.msra.mxu0 0.0
    %218 = vmatpush.msra.mxu0 0.0
    %219 = vmatpush.msra.mxu0 0.0
    %220 = vmatpush.msra.mxu0 0.0
    %221 = vmatpush.msra.mxu0 0.0
    %222 = vmatpush.msra.mxu0 0.0
    %223 = vmatpush.msra.mxu0 0.0
    %224 = vmatpush.msra.mxu0 0.0
    %225 = vmatpush.msra.mxu0 %v183
    %226 = vmatpush.msra.mxu0 %v181
    %227 = vmatpush.msra.mxu0 %v179
    %228 = vmatpush.msra.mxu0 %v177
    %229 = vmatmul.f32.gmra.mxu0 %v191
    %v230 = vpop.f32.mrf.mxu0
    %v231 = vadd.f32 %v188, %v230
    %232 = vdwg.mxu0
    %v233 = vld [vmem:[#allocation3] sm:$0x1]
    %v235 = vperm.slane %v233, 0
    %v237 = vadd.f32 %v211, %v235
    %v238 = vmax.f32 %v237, 0.0
    %v239 = vsub.f32 0.0, %v231
    %v240 = vmul.f32 %v239, 1.442695
    %v241 = vpow.pop %v240
    %v242 = vadd.f32 %v241, 1.0
    %v243 = vrcp.pop %v242
    %v244 = vmul.f32 %v242, %v243
    %v245 = vsub.f32 1.0, %v244
    %v246 = vmul.f32 %v243, %v245
    %v247 = vadd.f32 %v243, %v246
    %vm248 = vweird.f32 %v242
    %vm249 = vweird.f32 %v243
    %vm250 = vmor %vm248, %vm249
    %v251 = vsel %vm250, %v243, %v247
    %v252 = vand.u32 2147483647, %v242
    %vm253 = vcmp.eq.f32.partialorder %v252, 8.507059e+37
    %v254 = vand.u32 %v242, 2147483648
    %v255 = vor.u32 1.1754944e-38, %v254
    %v256 = vsel %vm253, %v255, %v251
    %v257 = vmul.f32 1.0, %v256
    %v258 = vround.ne.pseudo %v257
    %v259 = vld [vmem:[#allocation4 + $0x28] ss:$0 sm:$0xff]
    %v260 = vmul.f32 %v238, %v259
    %v261 = vsel %vm174, %v260, 0.0
    %262 = vadd.xlane.f32.xlu0 %v261
    %v263 = vpop.xlane.xlu0 %262
    %265 = vrot.lane.b32.xlu0 %v260, 96
    %v266 = vpop.permute.xlu0 %265
    %v268 = vsel %vm174, %v266, 0.0
    %269 = vadd.xlane.f32.xlu0 %v268
    %v270 = vpop.xlane.xlu0 %269
    %271 = vrot.lane.b32.xlu0 %v260, 64
    %v272 = vpop.permute.xlu0 %271
    %v274 = vsel %vm174, %v272, 0.0
    %275 = vadd.xlane.f32.xlu0 %v274
    %v276 = vpop.xlane.xlu0 %275
    %277 = vrot.lane.b32.xlu0 %v260, 32
    %v278 = vpop.permute.xlu0 %277
    %v280 = vsel %vm174, %v278, 0.0
    %281 = vadd.xlane.f32.xlu0 %v280
    %v282 = vpop.xlane.xlu0 %281
    %vm283 = vcmask 7168
    %v284 = vsel %vm283, %v263, %v270
    %vm285 = vcmask 15360
    %v286 = vsel %vm285, %v284, %v276
    %vm287 = vcmask 23552
    %v288 = vsel %vm287, %v286, %v282
    %v289 = vld [vmem:[#allocation4 + $0x128] ss:$0 sm:$0xff]
    %v290 = vadd.f32 %v288, %v289
    %vm291 = vcmask 25600
    %v292 = vsel %vm291, %v290, -inf
    %293 = vmax.xlane.f32.xlu0 %v292
    %v294 = vpop.xlane.xlu0 %293
    %v295 = vsub.f32 %v290, %v294
    %v296 = vmul.f32 %v295, 1.442695
    %v297 = vpow.pop %v296
    %v298 = vsel %vm291, %v297, 0.0
    %299 = vadd.xlane.f32.xlu0 %v298
    %v300 = vpop.xlane.xlu0 %299
    %v301 = vrcp.pop %v300
    %v302 = vmul.f32 %v300, %v301
    %v303 = vsub.f32 1.0, %v302
    %v304 = vmul.f32 %v301, %v303
    %v305 = vadd.f32 %v301, %v304
    %vm306 = vweird.f32 %v300
    %vm307 = vweird.f32 %v301
    %vm308 = vmor %vm306, %vm307
    %v309 = vsel %vm308, %v301, %v305
    %v310 = vand.u32 2147483647, %v300
    %vm311 = vcmp.eq.f32.partialorder %v310, 8.507059e+37
    %v312 = vand.u32 %v300, 2147483648
    %v313 = vor.u32 1.1754944e-38, %v312
    %v314 = vsel %vm311, %v313, %v309
    %v315 = vmul.f32 %v297, %v314
    %v316 = vld [vmem:[%s2] sm:$0xf]
    %vm317 = vcmask 31744
    %v319 = vsel %vm317, %v315, 0
    %vm321 = vcmask 1043456
    %v323 = vsel %vm321, %v316, 0
    %325 = vmatpush.msra.mxu0 0.0
    %326 = vmatpush.msra.mxu0 0.0
    %327 = vmatpush.msra.mxu0 0.0
    %328 = vmatpush.msra.mxu0 0.0
    %329 = vmatpush.msra.mxu0 0.0
    %330 = vmatpush.msra.mxu0 0.0
    %331 = vmatpush.msra.mxu0 0.0
    %332 = vmatpush.msra.mxu0 0.0
    %333 = vmatpush.msra.mxu0 0.0
    %334 = vmatpush.msra.mxu0 0.0
    %335 = vmatpush.msra.mxu0 0.0
    %336 = vmatpush.msra.mxu0 0.0
    %337 = vmatpush.msra.mxu0 0.0
    %338 = vmatpush.msra.mxu0 0.0
    %339 = vmatpush.msra.mxu0 0.0
    %340 = vmatpush.msra.mxu0 %v323
    %341 = vmatmul.f32.gmra.mxu0 %v319
    %v342 = vpop.f32.mrf.mxu0
    %v343 = vadd.f32 0.0, %v342
    %344 = vdwg.mxu0
    %v345 = vld [vmem:[#allocation4 + $0x30] sm:$0xff]
    %vm346 = vcmask 64512
    %v348 = vsel %vm346, %v343, 0
    %350 = vmatpush.msra.mxu0 0.0
    %351 = vmatpush.msra.mxu0 0.0
    %352 = vmatpush.msra.mxu0 0.0
    %353 = vmatpush.msra.mxu0 0.0
    %354 = vmatpush.msra.mxu0 0.0
    %355 = vmatpush.msra.mxu0 0.0
    %356 = vmatpush.msra.mxu0 0.0
    %357 = vmatpush.msra.mxu0 0.0
    %358 = vmatpush.msra.mxu0 0.0
    %359 = vmatpush.msra.mxu0 0.0
    %360 = vmatpush.msra.mxu0 0.0
    %361 = vmatpush.msra.mxu0 0.0
    %362 = vmatpush.msra.mxu0 0.0
    %363 = vmatpush.msra.mxu0 0.0
    %364 = vmatpush.msra.mxu0 0.0
    %365 = vmatpush.msra.mxu0 %v345
    %366 = vmatmul.f32.gmra.mxu0 %v348
    %v367 = vpop.f32.mrf.mxu0
    %v368 = vadd.f32 0.0, %v367
    %369 = vdwg.mxu0
    %v370 = vadd.f32 %v231, %v368
    %v371 = vtanh.pop %v370
    %v372 = vld [vmem:[#allocation4 + $0x38] sm:$0xff]
    %v373 = vld [vmem:[#allocation4 + $0x78] sm:$0xff]
    %v374 = vld [vmem:[#allocation4 + $0xb8] sm:$0xff]
    %v375 = vld [vmem:[#allocation4 + $0xf8] sm:$0xff]
    %v376 = vld [vmem:[#allocation4 + $0x138] ss:$0 sm:$0xff]
    %v378 = vsel %vm104, %v371, 0
    %380 = vmatpush.msra.mxu0 0.0
    %381 = vmatpush.msra.mxu0 0.0
    %382 = vmatpush.msra.mxu0 0.0
    %383 = vmatpush.msra.mxu0 0.0
    %384 = vmatpush.msra.mxu0 0.0
    %385 = vmatpush.msra.mxu0 0.0
    %386 = vmatpush.msra.mxu0 0.0
    %387 = vmatpush.msra.mxu0 0.0
    %388 = vmatpush.msra.mxu0 0.0
    %389 = vmatpush.msra.mxu0 0.0
    %390 = vmatpush.msra.mxu0 0.0
    %391 = vmatpush.msra.mxu0 0.0
    %392 = vmatpush.msra.mxu0 %v375
    %393 = vmatpush.msra.mxu0 %v374
    %394 = vmatpush.msra.mxu0 %v373
    %395 = vmatpush.msra.mxu0 %v372
    %396 = vmatmul.f32.gmra.mxu0 %v378
    %v397 = vpop.f32.mrf.mxu0
    %v398 = vadd.f32 %v376, %v397
    %399 = vdwg.mxu0
    %v400 = vsub.f32 0.0, %v398
    %v401 = vmul.f32 %v400, 1.442695
    %v402 = vpow.pop %v401
    %v403 = vadd.f32 %v402, 1.0
    %v404 = vrcp.pop %v403
    %v405 = vmul.f32 %v403, %v404
    %v406 = vsub.f32 1.0, %v405
    %v407 = vmul.f32 %v404, %v406
    %v408 = vadd.f32 %v404, %v407
    %vm409 = vweird.f32 %v403
    %vm410 = vweird.f32 %v404
    %vm411 = vmor %vm409, %vm410
    %v412 = vsel %vm411, %v404, %v408
    %v413 = vand.u32 2147483647, %v403
    %vm414 = vcmp.eq.f32.partialorder %v413, 8.507059e+37
    %v415 = vand.u32 %v403, 2147483648
    %v416 = vor.u32 1.1754944e-38, %v415
    %v417 = vsel %vm414, %v416, %v412
    %v418 = vmul.f32 1.0, %v417
    %v419 = vround.ne.pseudo %v418
    %420 = vst.msk [vmem:[%s4] sm:$0x3] %vm174, %v172
    %422 = vrot.lane.b32.xlu0 %v418, 32
    %v423 = vpop.permute.xlu0 %422
    %vm425 = vcmask 386304
    %426 = vst.msk [vmem:[%s4] sm:$0x3] %vm425, %v423
    %428 = vrot.lane.b32.xlu0 %v419, 48
    %v429 = vpop.permute.xlu0 %428
    %vm431 = vcmask 517504
    %432 = vst.msk [vmem:[%s4] sm:$0x3] %vm431, %v429
    %434 = vrot.lane.b32.xlu0 %v290, 64
    %v435 = vpop.permute.xlu0 %434
    %vm437 = vcmask 550400
    %438 = vst.msk [vmem:[%s4] sm:$0x3] %vm437, %v435
    %440 = vrot.lane.b32.xlu0 %v257, 36
    %v441 = vpop.permute.xlu0 %440
    %vm443 = vcmask 558624
    %444 = vst.msk [vmem:[%s4] sm:$0x3] %vm443, %v441
    %446 = vrot.lane.b32.xlu0 %v258, 37
    %v447 = vpop.permute.xlu0 %446
    %vm449 = vcmask 566824
    %450 = vst.msk [vmem:[%s4] sm:$0x3] %vm449, %v447
    // Predicated region
    $region26: #{receiver_forward.1} parent=1 // pred_check
      _
    $region27: #{receiver_forward.1} parent=1 // pred_check_branch
      %452 = sbr.rel (0) target = $region29
    $region28: #{receiver_forward.1} parent=1 // pred_region
      _
    $region29: #{receiver_forward.1} parent=1 // pred_fallthru
      _
    // Predicated region
    $region30: #{receiver_forward.1} parent=1 // pred_check
      _
    $region31: #{receiver_forward.1} parent=1 // pred_check_branch
      %454 = sbr.rel (0) target = $region33
    $region32: #{receiver_forward.1} parent=1 // pred_region
      _
    $region33: #{receiver_forward.1} parent=1 // pred_fallthru
      _
    %455 = vsyncpa [#allocation5], 1

</llo_original>
